<compile_context>
chip_gen: v5e
topology: v5e:2x2
jax: 0.10.0
libtpu: 0.0.40
codegen_flags: <defaults>
</compile_context>

<pallas_src>
import jax
import jax.numpy as jnp
from jax.experimental import pallas as pl
from jax.experimental.pallas import tpu as pltpu

# --- model hyperparameters (from the PyTorch module) ---
INPUT_NEURONS = 16        # train_inputs.shape[1] -- synthetic choice
NEURONS_PER_LAYER = 64
OUTPUT_NEURONS = 1
HIDDEN_LAYERS = 4
DROPOUT = 0.3             # TODO(synk): training-mode dropout (random mask + 1/(1-p) scale) not implemented; eval-mode identity used.

DEFAULT_BATCH_TILE = 4096  # large tiles amortize the ~0.35 us per-grid-step overhead
_LANE = 128                # TPU lane width; last block dim must be a multiple of this


def _cdiv(a, b):
    return (a + b - 1) // b


def _round_up(n, m):
    return ((n + m - 1) // m) * m


def _choose_tiling(B, batch_tile):
    """Pick (TB, B_pad): lane-aligned tile minimizing padding overshoot.

    For batches big enough to matter, keep >= 2 grid steps so both v7x
    TensorCores get work (harmless on single-TC v5e/v6e).
    """
    B_min = _round_up(B, _LANE)
    num_tiles = _cdiv(B_min, batch_tile)
    if B_min >= 4 * _LANE:
        num_tiles = max(num_tiles, 2)
    TB = _round_up(_cdiv(B_min, num_tiles), _LANE)
    B_pad = _round_up(B_min, TB)
    return TB, B_pad


def mlp_kernel(x_ref, w0t_ref, b0_ref, wht_ref, bh_ref, wo_ref, bo_ref, o_ref):
    # x_ref  : (D_in, TB) f32   -- batch on the lane axis, cast to bf16 in-kernel
    # w0t_ref: (H, D_in)  bf16  -- W0^T
    # b0_ref : (H, 1)     f32
    # wht_ref: (L, H, H)  bf16  -- per-layer W_l^T
    # bh_ref : (L, H, 1)  f32
    # wo_ref : (H, 1)     f32   -- output weight column (used on VPU/XLU)
    # bo_ref : (1, 1)     f32
    # o_ref  : (1, TB)    f32   -- lane-dense output row
    x = x_ref[...].astype(jnp.bfloat16)            # in-kernel cast rides VPU slack

    # Input layer + ReLU: (H, D_in) @ (D_in, TB) -> (H, TB), f32 accumulation.
    h = jnp.dot(w0t_ref[...], x, preferred_element_type=jnp.float32) + b0_ref[...]
    h = jnp.maximum(h, 0.0)

    # Hidden layers: Linear -> ReLU -> Dropout(identity in eval). Short fixed
    # trip count: keep unrolled.
    bh = bh_ref[...]
    for l in range(HIDDEN_LAYERS):
        h = jnp.dot(wht_ref[l], h.astype(jnp.bfloat16),
                    preferred_element_type=jnp.float32) + bh[l]
        h = jnp.maximum(h, 0.0)

    # Output layer (N=1): VPU multiply + sublane reduction -> lane-dense (1, TB).
    out = jnp.sum(h * wo_ref[...], axis=0, keepdims=True) + bo_ref[...]
    o_ref[...] = out.astype(o_ref.dtype)


def net_forward(x, params, batch_tile=DEFAULT_BATCH_TILE):
    """x: (..., INPUT_NEURONS) -> (B, OUTPUT_NEURONS); B = prod(leading dims)."""
    w0, b0, wh, bh, wo, bo = params
    x2d = x.reshape(-1, INPUT_NEURONS)             # torch: x.view(-1, input_neurons)
    B = x2d.shape[0]

    TB, B_pad = _choose_tiling(B, batch_tile)

    # Batch-on-lanes layout: x^T is (D_in, B); pad the (cheap) lane axis only.
    xT = x2d.T
    if B_pad != B:
        xT = jnp.pad(xT, ((0, 0), (0, B_pad - B)))

    # Weight prep (tiny, one-time): transposed for the h^T = W^T @ h^T form,
    # bf16 MXU operands; biases / output weight stay f32.
    w0t = w0.T.astype(jnp.bfloat16)                              # (H, D_in)
    wht = jnp.transpose(wh, (0, 2, 1)).astype(jnp.bfloat16)      # (L, H, H)
    b0c = b0.reshape(NEURONS_PER_LAYER, 1)                       # (H, 1)
    bhc = bh.reshape(HIDDEN_LAYERS, NEURONS_PER_LAYER, 1)        # (L, H, 1)
    woc = wo.reshape(NEURONS_PER_LAYER, 1).astype(jnp.float32)   # (H, 1)
    boc = bo.reshape(1, 1)                                       # (1, 1)

    grid = (B_pad // TB,)
    out = pl.pallas_call(
        mlp_kernel,
        out_shape=jax.ShapeDtypeStruct((1, B_pad), jnp.float32),
        grid=grid,
        in_specs=[
            pl.BlockSpec((INPUT_NEURONS, TB), lambda i: (0, i)),                     # x^T (tiled on lanes)
            pl.BlockSpec((NEURONS_PER_LAYER, INPUT_NEURONS), lambda i: (0, 0)),      # W0^T (resident)
            pl.BlockSpec((NEURONS_PER_LAYER, 1), lambda i: (0, 0)),                  # b0
            pl.BlockSpec((HIDDEN_LAYERS, NEURONS_PER_LAYER, NEURONS_PER_LAYER),
                         lambda i: (0, 0, 0)),                                       # W_l^T (stacked)
            pl.BlockSpec((HIDDEN_LAYERS, NEURONS_PER_LAYER, 1), lambda i: (0, 0, 0)),  # b_l (stacked)
            pl.BlockSpec((NEURONS_PER_LAYER, 1), lambda i: (0, 0)),                  # wo column
            pl.BlockSpec((1, 1), lambda i: (0, 0)),                                  # bo
        ],
        out_specs=pl.BlockSpec((1, TB), lambda i: (0, i)),                           # lane-dense output row
        compiler_params=pltpu.CompilerParams(
            dimension_semantics=("parallel",),     # megacore sharding on v7x
        ),
    )(xT, w0t, b0c, wht, bhc, woc, boc)
    return out[0, :B].reshape(B, OUTPUT_NEURONS)


def init_params(key):
    """Deterministic synthetic init (uniform, a la torch default Linear init)."""
    ks = jax.random.split(key, 6)

    def unif(k, shape, fan_in):
        bound = 1.0 / jnp.sqrt(fan_in)
        return jax.random.uniform(k, shape, jnp.float32, -bound, bound)

    w0 = unif(ks[0], (INPUT_NEURONS, NEURONS_PER_LAYER), INPUT_NEURONS)
    b0 = unif(ks[1], (1, NEURONS_PER_LAYER), INPUT_NEURONS)
    wh = unif(ks[2], (HIDDEN_LAYERS, NEURONS_PER_LAYER, NEURONS_PER_LAYER),
              NEURONS_PER_LAYER)
    bh = unif(ks[3], (HIDDEN_LAYERS, NEURONS_PER_LAYER), NEURONS_PER_LAYER)
    wo = unif(ks[4], (NEURONS_PER_LAYER, OUTPUT_NEURONS), NEURONS_PER_LAYER)
    bo = unif(ks[5], (1, OUTPUT_NEURONS), NEURONS_PER_LAYER)
    return (w0, b0, wh, bh, wo, bo)


def reference_forward(x, params):
    """Pure-JAX reference matching the kernel's numerics (bf16 dots, f32 accum).

    Note: this matches the kernel's bf16 MXU numerics, not a pure-f32 (PyTorch)
    forward; drift vs. f32 is the usual bf16 rounding.
    """
    w0, b0, wh, bh, wo, bo = params
    h = x.reshape(-1, INPUT_NEURONS).astype(jnp.bfloat16)
    h = jnp.maximum(jnp.dot(h, w0.astype(jnp.bfloat16),
                            preferred_element_type=jnp.float32)
                    + b0.reshape(1, -1), 0.0)
    for l in range(HIDDEN_LAYERS):
        h = jnp.dot(h.astype(jnp.bfloat16), wh[l].astype(jnp.bfloat16),
                    preferred_element_type=jnp.float32) + bh[l].reshape(1, -1)
        h = jnp.maximum(h, 0.0)
    return jnp.dot(h, wo.reshape(-1, 1).astype(jnp.float32)) + bo.reshape(1, 1)


if __name__ == "__main__":
    key = jax.random.PRNGKey(0)
    pkey, xkey, xkey2 = jax.random.split(key, 3)
    params = init_params(pkey)

    # Small demo batch (single grid step).
    batch = 8
    x = jax.random.normal(xkey, (batch, INPUT_NEURONS), dtype=jnp.float32)
    out = jax.block_until_ready(net_forward(x, params))
    ref = reference_forward(x, params)
    assert out.shape == (batch, OUTPUT_NEURONS)
    assert jnp.allclose(out, ref, atol=1e-3, rtol=1e-3)

    # Larger, non-tile-aligned batch: exercises adaptive tiling + 2-step grid.
    batch2 = 600
    x2 = jax.random.normal(xkey2, (batch2, INPUT_NEURONS), dtype=jnp.float32)
    out2 = jax.block_until_ready(net_forward(x2, params))
    ref2 = reference_forward(x2, params)
    assert out2.shape == (batch2, OUTPUT_NEURONS)
    assert jnp.allclose(out2, ref2, atol=1e-3, rtol=1e-3)

    print("KERNEL_OK")
</pallas_src>

<mosaic_0001>
module attributes {stable_mosaic.version = 11 : i64} {
  func.func @mlp_kernel(%arg0: i32, %arg1: memref<16x128xf32, #tpu.memory_space<vmem>>, %arg2: memref<64x16xbf16, #tpu.memory_space<vmem>>, %arg3: memref<64x1xf32, #tpu.memory_space<vmem>>, %arg4: memref<4x64x64xbf16, #tpu.memory_space<vmem>>, %arg5: memref<4x64x1xf32, #tpu.memory_space<vmem>>, %arg6: memref<64x1xf32, #tpu.memory_space<vmem>>, %arg7: memref<1x1xf32, #tpu.memory_space<vmem>>, %arg8: memref<1x128xf32, #tpu.memory_space<vmem>>) attributes {dimension_semantics = [#tpu.dimension_semantics<parallel>], iteration_bounds = array<i64: 1>, scalar_prefetch = 0 : i64, scratch_operands = 0 : i64, tpu.core_type = #tpu.core_type<tc>, window_params = [{transform_indices = @transform_0, window_bounds = array<i64: 16, 128>}, {pipeline_mode = #tpu.pipeline_mode<synchronous>, transform_indices = @transform_1, window_bounds = array<i64: 64, 16>}, {pipeline_mode = #tpu.pipeline_mode<synchronous>, transform_indices = @transform_2, window_bounds = array<i64: 64, 1>}, {pipeline_mode = #tpu.pipeline_mode<synchronous>, transform_indices = @transform_3, window_bounds = array<i64: 4, 64, 64>}, {pipeline_mode = #tpu.pipeline_mode<synchronous>, transform_indices = @transform_4, window_bounds = array<i64: 4, 64, 1>}, {pipeline_mode = #tpu.pipeline_mode<synchronous>, transform_indices = @transform_5, window_bounds = array<i64: 64, 1>}, {pipeline_mode = #tpu.pipeline_mode<synchronous>, transform_indices = @transform_6, window_bounds = array<i64: 1, 1>}, {transform_indices = @transform_7, window_bounds = array<i64: 1, 128>}]} {
    %c0 = arith.constant 0 : index
    %c0_0 = arith.constant 0 : index
    %0 = vector.load %arg1[%c0, %c0_0] : memref<16x128xf32, #tpu.memory_space<vmem>>, vector<16x128xf32>
    %1 = arith.truncf %0 : vector<16x128xf32> to vector<16x128xbf16>
    %c0_1 = arith.constant 0 : index
    %c0_2 = arith.constant 0 : index
    %2 = vector.load %arg2[%c0_1, %c0_2] : memref<64x16xbf16, #tpu.memory_space<vmem>>, vector<64x16xbf16>
    %cst = arith.constant dense<0.000000e+00> : vector<64x128xf32>
    %3 = tpu.matmul %2, %1, %cst {dimension_numbers = #tpu.dot_dimension_numbers<[1], [0], [0], [1], [0, 0, 1, 1], [], []>} : vector<64x16xbf16>, vector<16x128xbf16>, vector<64x128xf32> -> vector<64x128xf32>
    %c0_3 = arith.constant 0 : index
    %c0_4 = arith.constant 0 : index
    %4 = vector.load %arg3[%c0_3, %c0_4] : memref<64x1xf32, #tpu.memory_space<vmem>>, vector<64x1xf32>
    %5 = vector.broadcast %4 : vector<64x1xf32> to vector<64x128xf32>
    %6 = arith.addf %3, %5 : vector<64x128xf32>
    %cst_5 = arith.constant 0.000000e+00 : f32
    %7 = vector.broadcast %cst_5 : f32 to vector<64x128xf32>
    %8 = arith.maximumf %6, %7 : vector<64x128xf32>
    %c0_6 = arith.constant 0 : index
    %c0_7 = arith.constant 0 : index
    %c0_8 = arith.constant 0 : index
    %9 = vector.load %arg5[%c0_6, %c0_7, %c0_8] : memref<4x64x1xf32, #tpu.memory_space<vmem>>, vector<4x64x1xf32>
    %c0_9 = arith.constant 0 : index
    %c0_10 = arith.constant 0 : index
    %c0_11 = arith.constant 0 : index
    %10 = vector.load %arg4[%c0_9, %c0_10, %c0_11] : memref<4x64x64xbf16, #tpu.memory_space<vmem>>, vector<1x64x64xbf16>
    %11 = vector.shape_cast %10 : vector<1x64x64xbf16> to vector<64x64xbf16>
    %12 = arith.truncf %8 : vector<64x128xf32> to vector<64x128xbf16>
    %cst_12 = arith.constant dense<0.000000e+00> : vector<64x128xf32>
    %13 = tpu.matmul %11, %12, %cst_12 {dimension_numbers = #tpu.dot_dimension_numbers<[1], [0], [0], [1], [0, 0, 1, 1], [], []>} : vector<64x64xbf16>, vector<64x128xbf16>, vector<64x128xf32> -> vector<64x128xf32>
    %14 = vector.extract_strided_slice %9 {offsets = [0, 0, 0], sizes = [1, 64, 1], strides = [1, 1, 1]} : vector<4x64x1xf32> to vector<1x64x1xf32>
    %15 = vector.shape_cast %14 : vector<1x64x1xf32> to vector<64x1xf32>
    %16 = vector.broadcast %15 : vector<64x1xf32> to vector<64x128xf32>
    %17 = arith.addf %13, %16 : vector<64x128xf32>
    %cst_13 = arith.constant 0.000000e+00 : f32
    %18 = vector.broadcast %cst_13 : f32 to vector<64x128xf32>
    %19 = arith.maximumf %17, %18 : vector<64x128xf32>
    %c1 = arith.constant 1 : index
    %c0_14 = arith.constant 0 : index
    %c0_15 = arith.constant 0 : index
    %20 = vector.load %arg4[%c1, %c0_14, %c0_15] : memref<4x64x64xbf16, #tpu.memory_space<vmem>>, vector<1x64x64xbf16>
    %21 = vector.shape_cast %20 : vector<1x64x64xbf16> to vector<64x64xbf16>
    %22 = arith.truncf %19 : vector<64x128xf32> to vector<64x128xbf16>
    %cst_16 = arith.constant dense<0.000000e+00> : vector<64x128xf32>
    %23 = tpu.matmul %21, %22, %cst_16 {dimension_numbers = #tpu.dot_dimension_numbers<[1], [0], [0], [1], [0, 0, 1, 1], [], []>} : vector<64x64xbf16>, vector<64x128xbf16>, vector<64x128xf32> -> vector<64x128xf32>
    %24 = vector.extract_strided_slice %9 {offsets = [1, 0, 0], sizes = [1, 64, 1], strides = [1, 1, 1]} : vector<4x64x1xf32> to vector<1x64x1xf32>
    %25 = vector.shape_cast %24 : vector<1x64x1xf32> to vector<64x1xf32>
    %26 = vector.broadcast %25 : vector<64x1xf32> to vector<64x128xf32>
    %27 = arith.addf %23, %26 : vector<64x128xf32>
    %cst_17 = arith.constant 0.000000e+00 : f32
    %28 = vector.broadcast %cst_17 : f32 to vector<64x128xf32>
    %29 = arith.maximumf %27, %28 : vector<64x128xf32>
    %c2 = arith.constant 2 : index
    %c0_18 = arith.constant 0 : index
    %c0_19 = arith.constant 0 : index
    %30 = vector.load %arg4[%c2, %c0_18, %c0_19] : memref<4x64x64xbf16, #tpu.memory_space<vmem>>, vector<1x64x64xbf16>
    %31 = vector.shape_cast %30 : vector<1x64x64xbf16> to vector<64x64xbf16>
    %32 = arith.truncf %29 : vector<64x128xf32> to vector<64x128xbf16>
    %cst_20 = arith.constant dense<0.000000e+00> : vector<64x128xf32>
    %33 = tpu.matmul %31, %32, %cst_20 {dimension_numbers = #tpu.dot_dimension_numbers<[1], [0], [0], [1], [0, 0, 1, 1], [], []>} : vector<64x64xbf16>, vector<64x128xbf16>, vector<64x128xf32> -> vector<64x128xf32>
    %34 = vector.extract_strided_slice %9 {offsets = [2, 0, 0], sizes = [1, 64, 1], strides = [1, 1, 1]} : vector<4x64x1xf32> to vector<1x64x1xf32>
    %35 = vector.shape_cast %34 : vector<1x64x1xf32> to vector<64x1xf32>
    %36 = vector.broadcast %35 : vector<64x1xf32> to vector<64x128xf32>
    %37 = arith.addf %33, %36 : vector<64x128xf32>
    %cst_21 = arith.constant 0.000000e+00 : f32
    %38 = vector.broadcast %cst_21 : f32 to vector<64x128xf32>
    %39 = arith.maximumf %37, %38 : vector<64x128xf32>
    %c3 = arith.constant 3 : index
    %c0_22 = arith.constant 0 : index
    %c0_23 = arith.constant 0 : index
    %40 = vector.load %arg4[%c3, %c0_22, %c0_23] : memref<4x64x64xbf16, #tpu.memory_space<vmem>>, vector<1x64x64xbf16>
    %41 = vector.shape_cast %40 : vector<1x64x64xbf16> to vector<64x64xbf16>
    %42 = arith.truncf %39 : vector<64x128xf32> to vector<64x128xbf16>
    %cst_24 = arith.constant dense<0.000000e+00> : vector<64x128xf32>
    %43 = tpu.matmul %41, %42, %cst_24 {dimension_numbers = #tpu.dot_dimension_numbers<[1], [0], [0], [1], [0, 0, 1, 1], [], []>} : vector<64x64xbf16>, vector<64x128xbf16>, vector<64x128xf32> -> vector<64x128xf32>
    %44 = vector.extract_strided_slice %9 {offsets = [3, 0, 0], sizes = [1, 64, 1], strides = [1, 1, 1]} : vector<4x64x1xf32> to vector<1x64x1xf32>
    %45 = vector.shape_cast %44 : vector<1x64x1xf32> to vector<64x1xf32>
    %46 = vector.broadcast %45 : vector<64x1xf32> to vector<64x128xf32>
    %47 = arith.addf %43, %46 : vector<64x128xf32>
    %cst_25 = arith.constant 0.000000e+00 : f32
    %48 = vector.broadcast %cst_25 : f32 to vector<64x128xf32>
    %49 = arith.maximumf %47, %48 : vector<64x128xf32>
    %c0_26 = arith.constant 0 : index
    %c0_27 = arith.constant 0 : index
    %50 = vector.load %arg6[%c0_26, %c0_27] : memref<64x1xf32, #tpu.memory_space<vmem>>, vector<64x1xf32>
    %51 = vector.broadcast %50 : vector<64x1xf32> to vector<64x128xf32>
    %52 = arith.mulf %49, %51 : vector<64x128xf32>
    %cst_28 = arith.constant dense<0.000000e+00> : vector<128xf32>
    %53 = vector.multi_reduction <add>, %52, %cst_28 [0] : vector<64x128xf32> to vector<128xf32>
    %54 = vector.shape_cast %53 : vector<128xf32> to vector<1x128xf32>
    %c0_29 = arith.constant 0 : index
    %c0_30 = arith.constant 0 : index
    %55 = vector.load %arg7[%c0_29, %c0_30] : memref<1x1xf32, #tpu.memory_space<vmem>>, vector<1x1xf32>
    %56 = vector.broadcast %55 : vector<1x1xf32> to vector<1x128xf32>
    %57 = arith.addf %54, %56 : vector<1x128xf32>
    %c0_31 = arith.constant 0 : index
    %c0_32 = arith.constant 0 : index
    %58 = vector.load %arg8[%c0_31, %c0_32] : memref<1x128xf32, #tpu.memory_space<vmem>>, vector<1x128xf32>
    tpu.vector_store %arg8[%c0_31, %c0_32], %57 {strides = array<i32>} : memref<1x128xf32, #tpu.memory_space<vmem>>, vector<1x128xf32>,
    return
  }
  func.func @transform_0(%arg0: i32) -> (i32, i32) {
    %c0_i32 = arith.constant 0 : i32
    %c0_i32_0 = arith.constant 0 : i32
    return %c0_i32, %arg0 : i32, i32
  }
  func.func @transform_1(%arg0: i32) -> (i32, i32) {
    %c0_i32 = arith.constant 0 : i32
    %c0_i32_0 = arith.constant 0 : i32
    %c0_i32_1 = arith.constant 0 : i32
    return %c0_i32, %c0_i32_0 : i32, i32
  }
  func.func @transform_2(%arg0: i32) -> (i32, i32) {
    %c0_i32 = arith.constant 0 : i32
    %c0_i32_0 = arith.constant 0 : i32
    %c0_i32_1 = arith.constant 0 : i32
    return %c0_i32, %c0_i32_0 : i32, i32
  }
  func.func @transform_3(%arg0: i32) -> (i32, i32, i32) {
    %c0_i32 = arith.constant 0 : i32
    %c0_i32_0 = arith.constant 0 : i32
    %c0_i32_1 = arith.constant 0 : i32
    %c0_i32_2 = arith.constant 0 : i32
    return %c0_i32, %c0_i32_0, %c0_i32_1 : i32, i32, i32
  }
  func.func @transform_4(%arg0: i32) -> (i32, i32, i32) {
    %c0_i32 = arith.constant 0 : i32
    %c0_i32_0 = arith.constant 0 : i32
    %c0_i32_1 = arith.constant 0 : i32
    %c0_i32_2 = arith.constant 0 : i32
    return %c0_i32, %c0_i32_0, %c0_i32_1 : i32, i32, i32
  }
  func.func @transform_5(%arg0: i32) -> (i32, i32) {
    %c0_i32 = arith.constant 0 : i32
    %c0_i32_0 = arith.constant 0 : i32
    %c0_i32_1 = arith.constant 0 : i32
    return %c0_i32, %c0_i32_0 : i32, i32
  }
  func.func @transform_6(%arg0: i32) -> (i32, i32) {
    %c0_i32 = arith.constant 0 : i32
    %c0_i32_0 = arith.constant 0 : i32
    %c0_i32_1 = arith.constant 0 : i32
    return %c0_i32, %c0_i32_0 : i32, i32
  }
  func.func @transform_7(%arg0: i32) -> (i32, i32) {
    %c0_i32 = arith.constant 0 : i32
    %c0_i32_0 = arith.constant 0 : i32
    return %c0_i32, %arg0 : i32, i32
  }
}

</mosaic_0001>

<llo_original>
// kernel: tpu_custom_call.1
$region0: #{tpu_custom_call.1}
  #allocation0 [shape = 'u32[]', space=smem, size = 0x4, offset = 0x4, fixed_abs, tag = 'smem constant byte address 0x4 - core index']
  #allocation1 [shape = 'u32[72,128]{1,0:T(1,128)}', space=vmem, size = 0x9000, scoped, tag = 'internal scratch']
  #allocation2 [shape = 'f32[1,1]{1,0:T(1,128)S(1)}', space=vmem, size = 0x200, scoped, tag = 'scoped memory for tpu_custom_call.1']
  %s0 = inlined_call_operand.vmem [shape: f32[16,128], index: 0, kind: input, shape index: {}]
  %s1 = inlined_call_operand.vmem [shape: bf16[64,16], index: 1, kind: input, shape index: {}]
  %s2 = inlined_call_operand.vmem [shape: f32[64,1], index: 2, kind: input, shape index: {}]
  %s3 = inlined_call_operand.vmem [shape: bf16[4,64,64], index: 3, kind: input, shape index: {}]
  %s4 = inlined_call_operand.vmem [shape: f32[4,64,1], index: 4, kind: input, shape index: {}]
  %s5 = inlined_call_operand.vmem [shape: f32[64,1], index: 5, kind: input, shape index: {}]
  %s6 = inlined_call_operand.<no memory space> [shape: f32[1,1], index: 6, kind: input, shape index: {}]
  %s7 = inlined_call_operand.hbm [shape: f32[1,128], index: 7, kind: output, shape index: {}]
  %s8 = sld [smem:[#allocation0]]
  $region38: #{tpu_custom_call.1} parent=0
    _
  %s10 = ssub.s32 1, %s8
  %s11 = scalar_select 0, %s10, %s8
  %v12 = vstv %s6
  %13 = vst [vmem:[#allocation2] sm:$0x1] %v12
  $region1: #{tpu_custom_call.1} parent=0
    #allocation3 [shape = 'u8[512]{0}', space=vmem, size = 0x400, scoped, tag = 'output window, operand 0, single buffered']
    #allocation4 [shape = 's32[1]{0}', space=sflag, size = 0x4, scoped, tag = 'scoped memory for tpu_custom_call.1']
    %14 = vsyncpa [#allocation4], 0
    // Predicated region
    $region2: #{tpu_custom_call.1} parent=1 // pred_check
      _
    $region3: #{tpu_custom_call.1} parent=1 // pred_check_branch
      %16 = sbr.rel (0) target = $region5
    $region4: #{tpu_custom_call.1} parent=1 // pred_region
      _
    $region5: #{tpu_custom_call.1} parent=1 // pred_fallthru
      _
    // Predicated region
    $region6: #{tpu_custom_call.1} parent=1 // pred_check
      _
    $region7: #{tpu_custom_call.1} parent=1 // pred_check_branch
      %18 = sbr.rel (0) target = $region9
    $region8: #{tpu_custom_call.1} parent=1 // pred_region
      _
    $region9: #{tpu_custom_call.1} parent=1 // pred_fallthru
      _
    // Predicated region
    $region10: #{tpu_custom_call.1} parent=1 // pred_check
      _
    $region11: #{tpu_custom_call.1} parent=1 // pred_check_branch
      %20 = sbr.rel (0) target = $region13
    $region12: #{tpu_custom_call.1} parent=1 // pred_region
      _
    $region13: #{tpu_custom_call.1} parent=1 // pred_fallthru
      _
    // Predicated region
    $region14: #{tpu_custom_call.1} parent=1 // pred_check
      _
    $region15: #{tpu_custom_call.1} parent=1 // pred_check_branch
      %22 = sbr.rel (0) target = $region17
    $region16: #{tpu_custom_call.1} parent=1 // pred_region
      _
    $region17: #{tpu_custom_call.1} parent=1 // pred_fallthru
      _
    // Predicated region
    $region18: #{tpu_custom_call.1} parent=1 // pred_check
      _
    $region19: #{tpu_custom_call.1} parent=1 // pred_check_branch
      %24 = sbr.rel (0) target = $region21
    $region20: #{tpu_custom_call.1} parent=1 // pred_region
      _
    $region21: #{tpu_custom_call.1} parent=1 // pred_fallthru
      _
    // Predicated region
    $region22: #{tpu_custom_call.1} parent=1 // pred_check
      _
    $region23: #{tpu_custom_call.1} parent=1 // pred_check_branch
      %26 = sbr.rel (0) target = $region25
    $region24: #{tpu_custom_call.1} parent=1 // pred_region
      _
    $region25: #{tpu_custom_call.1} parent=1 // pred_fallthru
      _
    // Predicated region
    $region26: #{tpu_custom_call.1} parent=1 // pred_check
      _
    $region27: #{tpu_custom_call.1} parent=1 // pred_check_branch
      %28 = sbr.rel (0) target = $region29
    $region28: #{tpu_custom_call.1} parent=1 // pred_region
      _
    $region29: #{tpu_custom_call.1} parent=1 // pred_fallthru
      _
    %v30 = vld [vmem:[%s0] sm:$0xff]
    %v31 = vld [vmem:[%s0 + $0x8] sm:$0xff]
    %v32 = vpack.c.bf16 %v31, %v30
    %v33 = vld [vmem:[%s1] sm:$0xf]
    %v34 = vld [vmem:[%s1 + $0x4] sm:$0xf]
    %v35 = vld [vmem:[%s1 + $0x8] sm:$0xf]
    %v36 = vld [vmem:[%s1 + $0xc] sm:$0xf]
    %v37 = vld [vmem:[%s1 + $0x10] sm:$0xf]
    %v38 = vld [vmem:[%s1 + $0x14] sm:$0xf]
    %v39 = vld [vmem:[%s1 + $0x18] sm:$0xf]
    %v40 = vld [vmem:[%s1 + $0x1c] sm:$0xf]
    %v41 = vld [vmem:[%s2] sm:$0xff]
    %v42 = vld [vmem:[%s2 + $0x8] sm:$0xff]
    %v43 = vld [vmem:[%s2 + $0x10] sm:$0xff]
    %v44 = vld [vmem:[%s2 + $0x18] sm:$0xff]
    %v45 = vld [vmem:[%s2 + $0x20] sm:$0xff]
    %v46 = vld [vmem:[%s2 + $0x28] sm:$0xff]
    %v47 = vld [vmem:[%s2 + $0x30] sm:$0xff]
    %v48 = vld [vmem:[%s2 + $0x38] sm:$0xff]
    %50 = vset.pattern.permute.xlu0 0
    %51 = vperm.xlu0 %50, %v41
    %v52 = vpop.permute.xlu0 %51
    %55 = vset.pattern.permute.xlu0 0
    %56 = vperm.xlu0 %55, %v42
    %v57 = vpop.permute.xlu0 %56
    %60 = vset.pattern.permute.xlu0 0
    %61 = vperm.xlu0 %60, %v43
    %v62 = vpop.permute.xlu0 %61
    %65 = vset.pattern.permute.xlu0 0
    %66 = vperm.xlu0 %65, %v44
    %v67 = vpop.permute.xlu0 %66
    %70 = vset.pattern.permute.xlu0 0
    %71 = vperm.xlu0 %70, %v45
    %v72 = vpop.permute.xlu0 %71
    %75 = vset.pattern.permute.xlu0 0
    %76 = vperm.xlu0 %75, %v46
    %v77 = vpop.permute.xlu0 %76
    %80 = vset.pattern.permute.xlu0 0
    %81 = vperm.xlu0 %80, %v47
    %v82 = vpop.permute.xlu0 %81
    %85 = vset.pattern.permute.xlu0 0
    %86 = vperm.xlu0 %85, %v48
    %v87 = vpop.permute.xlu0 %86
    %v97 = vunpack.c.l.b16 %v33
    %v98 = vunpack.c.l.b16 %v34
    %v99 = vunpack.c.l.b16 %v35
    %v100 = vunpack.c.l.b16 %v36
    %v101 = vunpack.c.l.b16 %v37
    %v102 = vunpack.c.l.b16 %v38
    %v103 = vunpack.c.l.b16 %v39
    %v104 = vunpack.c.l.b16 %v40
    %v105 = vpack.c.b16 %v98, %v97
    %v106 = vpack.c.b16 %v100, %v99
    %v107 = vpack.c.b16 %v102, %v101
    %v108 = vpack.c.b16 %v104, %v103
    %vm109 = vcmask 130048
    %v111 = vsel %vm109, %v105, 0
    %v114 = vsel %vm109, %v106, 0
    %v117 = vsel %vm109, %v107, 0
    %v120 = vsel %vm109, %v108, 0
    %122 = vmatpush.bf16.msra.mxu0 0
    %123 = vmatpush.bf16.msra.mxu0 0
    %124 = vmatpush.bf16.msra.mxu0 0
    %125 = vmatpush.bf16.msra.mxu0 0
    %126 = vmatpush.bf16.msra.mxu0 0
    %127 = vmatpush.bf16.msra.mxu0 0
    %128 = vmatpush.bf16.msra.mxu0 0
    %129 = vmatpush.bf16.msra.mxu0 %v32
    %130 = vmatmul.bf16.gmra.mxu0 %v111
    %v131 = vpop.f32.mrf.mxu0
    %v132 = vadd.f32 %v52, %v131
    %v133 = vpop.f32.mrf.mxu0
    %v134 = vadd.f32 %v57, %v133
    %135 = vmatmul.bf16.gmra.mxu0 %v114
    %v136 = vpop.f32.mrf.mxu0
    %v137 = vadd.f32 %v62, %v136
    %v138 = vpop.f32.mrf.mxu0
    %v139 = vadd.f32 %v67, %v138
    %140 = vmatmul.bf16.gmra.mxu0 %v117
    %v141 = vpop.f32.mrf.mxu0
    %v142 = vadd.f32 %v72, %v141
    %v143 = vpop.f32.mrf.mxu0
    %v144 = vadd.f32 %v77, %v143
    %145 = vmatmul.bf16.gmra.mxu0 %v120
    %v146 = vpop.f32.mrf.mxu0
    %v147 = vadd.f32 %v82, %v146
    %v148 = vpop.f32.mrf.mxu0
    %v149 = vadd.f32 %v87, %v148
    %150 = vdwg.mxu0
    %v151 = vmax.f32 %v132, 0.0
    %v152 = vmax.f32 %v134, 0.0
    %v153 = vmax.f32 %v137, 0.0
    %v154 = vmax.f32 %v139, 0.0
    %v155 = vmax.f32 %v142, 0.0
    %v156 = vmax.f32 %v144, 0.0
    %v157 = vmax.f32 %v147, 0.0
    %v158 = vmax.f32 %v149, 0.0
    %v159 = vld [vmem:[%s4] sm:$0xff]
    %v160 = vld [vmem:[%s4 + $0x8] sm:$0xff]
    %v161 = vld [vmem:[%s4 + $0x10] sm:$0xff]
    %v162 = vld [vmem:[%s4 + $0x18] sm:$0xff]
    %v163 = vld [vmem:[%s4 + $0x20] sm:$0xff]
    %v164 = vld [vmem:[%s4 + $0x28] sm:$0xff]
    %v165 = vld [vmem:[%s4 + $0x30] sm:$0xff]
    %v166 = vld [vmem:[%s4 + $0x38] sm:$0xff]
    %v167 = vld [vmem:[%s4 + $0x40] sm:$0xff]
    %v168 = vld [vmem:[%s4 + $0x48] sm:$0xff]
    %v169 = vld [vmem:[%s4 + $0x50] sm:$0xff]
    %v170 = vld [vmem:[%s4 + $0x58] sm:$0xff]
    %v171 = vld [vmem:[%s4 + $0x60] sm:$0xff]
    %v172 = vld [vmem:[%s4 + $0x68] sm:$0xff]
    %v173 = vld [vmem:[%s4 + $0x70] sm:$0xff]
    %v174 = vld [vmem:[%s4 + $0x78] sm:$0xff]
    %v175 = vld [vmem:[%s4 + $0x80] sm:$0xff]
    %v176 = vld [vmem:[%s4 + $0x88] sm:$0xff]
    %v177 = vld [vmem:[%s4 + $0x90] sm:$0xff]
    %v178 = vld [vmem:[%s4 + $0x98] sm:$0xff]
    %v179 = vld [vmem:[%s4 + $0xa0] sm:$0xff]
    %v180 = vld [vmem:[%s4 + $0xa8] sm:$0xff]
    %v181 = vld [vmem:[%s4 + $0xb0] sm:$0xff]
    %v182 = vld [vmem:[%s4 + $0xb8] sm:$0xff]
    %v183 = vld [vmem:[%s4 + $0xc0] sm:$0xff]
    %v184 = vld [vmem:[%s4 + $0xc8] sm:$0xff]
    %v185 = vld [vmem:[%s4 + $0xd0] sm:$0xff]
    %v186 = vld [vmem:[%s4 + $0xd8] sm:$0xff]
    %v187 = vld [vmem:[%s4 + $0xe0] sm:$0xff]
    %v188 = vld [vmem:[%s4 + $0xe8] sm:$0xff]
    %v189 = vld [vmem:[%s4 + $0xf0] sm:$0xff]
    %v190 = vld [vmem:[%s4 + $0xf8] sm:$0xff]
    %v191 = vld [vmem:[%s3] sm:$0xf]
    %v192 = vld [vmem:[%s3 + $0x4] sm:$0xf]
    %v193 = vld [vmem:[%s3 + $0x8] sm:$0xf]
    %v194 = vld [vmem:[%s3 + $0xc] sm:$0xf]
    %v195 = vld [vmem:[%s3 + $0x10] sm:$0xf]
    %v196 = vld [vmem:[%s3 + $0x14] sm:$0xf]
    %v197 = vld [vmem:[%s3 + $0x18] sm:$0xf]
    %v198 = vld [vmem:[%s3 + $0x1c] sm:$0xf]
    %v199 = vpack.c.bf16 %v152, %v151
    %v200 = vpack.c.bf16 %v154, %v153
    %v201 = vpack.c.bf16 %v156, %v155
    %v202 = vpack.c.bf16 %v158, %v157
    %204 = vset.pattern.permute.xlu0 0
    %205 = vperm.xlu0 %204, %v159
    %v206 = vpop.permute.xlu0 %205
    %209 = vset.pattern.permute.xlu0 0
    %210 = vperm.xlu0 %209, %v160
    %v211 = vpop.permute.xlu0 %210
    %214 = vset.pattern.permute.xlu0 0
    %215 = vperm.xlu0 %214, %v161
    %v216 = vpop.permute.xlu0 %215
    %219 = vset.pattern.permute.xlu0 0
    %220 = vperm.xlu0 %219, %v162
    %v221 = vpop.permute.xlu0 %220
    %224 = vset.pattern.permute.xlu0 0
    %225 = vperm.xlu0 %224, %v163
    %v226 = vpop.permute.xlu0 %225
    %229 = vset.pattern.permute.xlu0 0
    %230 = vperm.xlu0 %229, %v164
    %v231 = vpop.permute.xlu0 %230
    %234 = vset.pattern.permute.xlu0 0
    %235 = vperm.xlu0 %234, %v165
    %v236 = vpop.permute.xlu0 %235
    %239 = vset.pattern.permute.xlu0 0
    %240 = vperm.xlu0 %239, %v166
    %v241 = vpop.permute.xlu0 %240
    %v251 = vunpack.c.l.b16 %v191
    %v252 = vunpack.c.l.b16 %v192
    %v253 = vunpack.c.l.b16 %v193
    %v254 = vunpack.c.l.b16 %v194
    %v255 = vunpack.c.l.b16 %v195
    %v256 = vunpack.c.l.b16 %v196
    %v257 = vunpack.c.l.b16 %v197
    %v258 = vunpack.c.l.b16 %v198
    %v259 = vpack.c.b16 %v252, %v251
    %v260 = vpack.c.b16 %v254, %v253
    %v261 = vpack.c.b16 %v256, %v255
    %v262 = vpack.c.b16 %v258, %v257
    %vm263 = vcmask 523264
    %v265 = vsel %vm263, %v259, 0
    %v268 = vsel %vm263, %v260, 0
    %v271 = vsel %vm263, %v261, 0
    %v274 = vsel %vm263, %v262, 0
    %276 = vmatpush.bf16.msra.mxu0 0
    %277 = vmatpush.bf16.msra.mxu0 0
    %278 = vmatpush.bf16.msra.mxu0 0
    %279 = vmatpush.bf16.msra.mxu0 0
    %280 = vmatpush.bf16.msra.mxu0 %v202
    %281 = vmatpush.bf16.msra.mxu0 %v201
    %282 = vmatpush.bf16.msra.mxu0 %v200
    %283 = vmatpush.bf16.msra.mxu0 %v199
    %284 = vmatmul.bf16.gmra.mxu0 %v265
    %v285 = vpop.f32.mrf.mxu0
    %v286 = vadd.f32 %v206, %v285
    %v287 = vpop.f32.mrf.mxu0
    %v288 = vadd.f32 %v211, %v287
    %289 = vmatmul.bf16.gmra.mxu0 %v268
    %v290 = vpop.f32.mrf.mxu0
    %v291 = vadd.f32 %v216, %v290
    %v292 = vpop.f32.mrf.mxu0
    %v293 = vadd.f32 %v221, %v292
    %294 = vmatmul.bf16.gmra.mxu0 %v271
    %v295 = vpop.f32.mrf.mxu0
    %v296 = vadd.f32 %v226, %v295
    %v297 = vpop.f32.mrf.mxu0
    %v298 = vadd.f32 %v231, %v297
    %299 = vmatmul.bf16.gmra.mxu0 %v274
    %v300 = vpop.f32.mrf.mxu0
    %v301 = vadd.f32 %v236, %v300
    %v302 = vpop.f32.mrf.mxu0
    %v303 = vadd.f32 %v241, %v302
    %304 = vdwg.mxu0
    %v305 = vmax.f32 %v286, 0.0
    %v306 = vmax.f32 %v288, 0.0
    %v307 = vmax.f32 %v291, 0.0
    %v308 = vmax.f32 %v293, 0.0
    %v309 = vmax.f32 %v296, 0.0
    %v310 = vmax.f32 %v298, 0.0
    %v311 = vmax.f32 %v301, 0.0
    %v312 = vmax.f32 %v303, 0.0
    %s313 = scalar_lea.vmem %s3, 32
    %v314 = vld [vmem:[%s313] sm:$0xf]
    %v315 = vld [vmem:[%s313 + $0x4] sm:$0xf]
    %v316 = vld [vmem:[%s313 + $0x8] sm:$0xf]
    %v317 = vld [vmem:[%s313 + $0xc] sm:$0xf]
    %v318 = vld [vmem:[%s313 + $0x10] sm:$0xf]
    %v319 = vld [vmem:[%s313 + $0x14] sm:$0xf]
    %v320 = vld [vmem:[%s313 + $0x18] sm:$0xf]
    %v321 = vld [vmem:[%s313 + $0x1c] sm:$0xf]
    %v322 = vpack.c.bf16 %v306, %v305
    %v323 = vpack.c.bf16 %v308, %v307
    %v324 = vpack.c.bf16 %v310, %v309
    %v325 = vpack.c.bf16 %v312, %v311
    %327 = vset.pattern.permute.xlu0 0
    %328 = vperm.xlu0 %327, %v167
    %v329 = vpop.permute.xlu0 %328
    %332 = vset.pattern.permute.xlu0 0
    %333 = vperm.xlu0 %332, %v168
    %v334 = vpop.permute.xlu0 %333
    %337 = vset.pattern.permute.xlu0 0
    %338 = vperm.xlu0 %337, %v169
    %v339 = vpop.permute.xlu0 %338
    %342 = vset.pattern.permute.xlu0 0
    %343 = vperm.xlu0 %342, %v170
    %v344 = vpop.permute.xlu0 %343
    %347 = vset.pattern.permute.xlu0 0
    %348 = vperm.xlu0 %347, %v171
    %v349 = vpop.permute.xlu0 %348
    %352 = vset.pattern.permute.xlu0 0
    %353 = vperm.xlu0 %352, %v172
    %v354 = vpop.permute.xlu0 %353
    %357 = vset.pattern.permute.xlu0 0
    %358 = vperm.xlu0 %357, %v173
    %v359 = vpop.permute.xlu0 %358
    %362 = vset.pattern.permute.xlu0 0
    %363 = vperm.xlu0 %362, %v174
    %v364 = vpop.permute.xlu0 %363
    %v374 = vunpack.c.l.b16 %v314
    %v375 = vunpack.c.l.b16 %v315
    %v376 = vunpack.c.l.b16 %v316
    %v377 = vunpack.c.l.b16 %v317
    %v378 = vunpack.c.l.b16 %v318
    %v379 = vunpack.c.l.b16 %v319
    %v380 = vunpack.c.l.b16 %v320
    %v381 = vunpack.c.l.b16 %v321
    %v382 = vpack.c.b16 %v375, %v374
    %v383 = vpack.c.b16 %v377, %v376
    %v384 = vpack.c.b16 %v379, %v378
    %v385 = vpack.c.b16 %v381, %v380
    %v387 = vsel %vm263, %v382, 0
    %v390 = vsel %vm263, %v383, 0
    %v393 = vsel %vm263, %v384, 0
    %v396 = vsel %vm263, %v385, 0
    %398 = vmatpush.bf16.msra.mxu0 0
    %399 = vmatpush.bf16.msra.mxu0 0
    %400 = vmatpush.bf16.msra.mxu0 0
    %401 = vmatpush.bf16.msra.mxu0 0
    %402 = vmatpush.bf16.msra.mxu0 %v325
    %403 = vmatpush.bf16.msra.mxu0 %v324
    %404 = vmatpush.bf16.msra.mxu0 %v323
    %405 = vmatpush.bf16.msra.mxu0 %v322
    %406 = vmatmul.bf16.gmra.mxu0 %v387
    %v407 = vpop.f32.mrf.mxu0
    %v408 = vadd.f32 %v329, %v407
    %v409 = vpop.f32.mrf.mxu0
    %v410 = vadd.f32 %v334, %v409
    %411 = vmatmul.bf16.gmra.mxu0 %v390
    %v412 = vpop.f32.mrf.mxu0
    %v413 = vadd.f32 %v339, %v412
    %v414 = vpop.f32.mrf.mxu0
    %v415 = vadd.f32 %v344, %v414
    %416 = vmatmul.bf16.gmra.mxu0 %v393
    %v417 = vpop.f32.mrf.mxu0
    %v418 = vadd.f32 %v349, %v417
    %v419 = vpop.f32.mrf.mxu0
    %v420 = vadd.f32 %v354, %v419
    %421 = vmatmul.bf16.gmra.mxu0 %v396
    %v422 = vpop.f32.mrf.mxu0
    %v423 = vadd.f32 %v359, %v422
    %v424 = vpop.f32.mrf.mxu0
    %v425 = vadd.f32 %v364, %v424
    %426 = vdwg.mxu0
    %v427 = vmax.f32 %v408, 0.0
    %v428 = vmax.f32 %v410, 0.0
    %v429 = vmax.f32 %v413, 0.0
    %v430 = vmax.f32 %v415, 0.0
    %v431 = vmax.f32 %v418, 0.0
    %v432 = vmax.f32 %v420, 0.0
    %v433 = vmax.f32 %v423, 0.0
    %v434 = vmax.f32 %v425, 0.0
    %s435 = scalar_lea.vmem %s3, 64
    %v436 = vld [vmem:[%s435] sm:$0xf]
    %v437 = vld [vmem:[%s435 + $0x4] sm:$0xf]
    %v438 = vld [vmem:[%s435 + $0x8] sm:$0xf]
    %v439 = vld [vmem:[%s435 + $0xc] sm:$0xf]
    %v440 = vld [vmem:[%s435 + $0x10] sm:$0xf]
    %v441 = vld [vmem:[%s435 + $0x14] sm:$0xf]
    %v442 = vld [vmem:[%s435 + $0x18] sm:$0xf]
    %v443 = vld [vmem:[%s435 + $0x1c] sm:$0xf]
    %v444 = vpack.c.bf16 %v428, %v427
    %v445 = vpack.c.bf16 %v430, %v429
    %v446 = vpack.c.bf16 %v432, %v431
    %v447 = vpack.c.bf16 %v434, %v433
    %449 = vset.pattern.permute.xlu0 0
    %450 = vperm.xlu0 %449, %v175
    %v451 = vpop.permute.xlu0 %450
    %454 = vset.pattern.permute.xlu0 0
    %455 = vperm.xlu0 %454, %v176
    %v456 = vpop.permute.xlu0 %455
    %459 = vset.pattern.permute.xlu0 0
    %460 = vperm.xlu0 %459, %v177
    %v461 = vpop.permute.xlu0 %460
    %464 = vset.pattern.permute.xlu0 0
    %465 = vperm.xlu0 %464, %v178
    %v466 = vpop.permute.xlu0 %465
    %469 = vset.pattern.permute.xlu0 0
    %470 = vperm.xlu0 %469, %v179
    %v471 = vpop.permute.xlu0 %470
    %474 = vset.pattern.permute.xlu0 0
    %475 = vperm.xlu0 %474, %v180
    %v476 = vpop.permute.xlu0 %475
    %479 = vset.pattern.permute.xlu0 0
    %480 = vperm.xlu0 %479, %v181
    %v481 = vpop.permute.xlu0 %480
    %484 = vset.pattern.permute.xlu0 0
    %485 = vperm.xlu0 %484, %v182
    %v486 = vpop.permute.xlu0 %485
    %v496 = vunpack.c.l.b16 %v436
    %v497 = vunpack.c.l.b16 %v437
    %v498 = vunpack.c.l.b16 %v438
    %v499 = vunpack.c.l.b16 %v439
    %v500 = vunpack.c.l.b16 %v440
    %v501 = vunpack.c.l.b16 %v441
    %v502 = vunpack.c.l.b16 %v442
    %v503 = vunpack.c.l.b16 %v443
    %v504 = vpack.c.b16 %v497, %v496
    %v505 = vpack.c.b16 %v499, %v498
    %v506 = vpack.c.b16 %v501, %v500
    %v507 = vpack.c.b16 %v503, %v502
    %v509 = vsel %vm263, %v504, 0
    %v512 = vsel %vm263, %v505, 0
    %v515 = vsel %vm263, %v506, 0
    %v518 = vsel %vm263, %v507, 0
    %520 = vmatpush.bf16.msra.mxu0 0
    %521 = vmatpush.bf16.msra.mxu0 0
    %522 = vmatpush.bf16.msra.mxu0 0
    %523 = vmatpush.bf16.msra.mxu0 0
    %524 = vmatpush.bf16.msra.mxu0 %v447
    %525 = vmatpush.bf16.msra.mxu0 %v446
    %526 = vmatpush.bf16.msra.mxu0 %v445
    %527 = vmatpush.bf16.msra.mxu0 %v444
    %528 = vmatmul.bf16.gmra.mxu0 %v509
    %v529 = vpop.f32.mrf.mxu0
    %v530 = vadd.f32 %v451, %v529
    %v531 = vpop.f32.mrf.mxu0
    %v532 = vadd.f32 %v456, %v531
    %533 = vmatmul.bf16.gmra.mxu0 %v512
    %v534 = vpop.f32.mrf.mxu0
    %v535 = vadd.f32 %v461, %v534
    %v536 = vpop.f32.mrf.mxu0
    %v537 = vadd.f32 %v466, %v536
    %538 = vmatmul.bf16.gmra.mxu0 %v515
    %v539 = vpop.f32.mrf.mxu0
    %v540 = vadd.f32 %v471, %v539
    %v541 = vpop.f32.mrf.mxu0
    %v542 = vadd.f32 %v476, %v541
    %543 = vmatmul.bf16.gmra.mxu0 %v518
    %v544 = vpop.f32.mrf.mxu0
    %v545 = vadd.f32 %v481, %v544
    %v546 = vpop.f32.mrf.mxu0
    %v547 = vadd.f32 %v486, %v546
    %548 = vdwg.mxu0
    %v549 = vmax.f32 %v530, 0.0
    %v550 = vmax.f32 %v532, 0.0
    %v551 = vmax.f32 %v535, 0.0
    %v552 = vmax.f32 %v537, 0.0
    %v553 = vmax.f32 %v540, 0.0
    %v554 = vmax.f32 %v542, 0.0
    %v555 = vmax.f32 %v545, 0.0
    %v556 = vmax.f32 %v547, 0.0
    %s557 = scalar_lea.vmem %s3, 96
    %v558 = vld [vmem:[%s557] sm:$0xf]
    %v559 = vld [vmem:[%s557 + $0x4] sm:$0xf]
    %v560 = vld [vmem:[%s557 + $0x8] sm:$0xf]
    %v561 = vld [vmem:[%s557 + $0xc] sm:$0xf]
    %v562 = vld [vmem:[%s557 + $0x10] sm:$0xf]
    %v563 = vld [vmem:[%s557 + $0x14] sm:$0xf]
    %v564 = vld [vmem:[%s557 + $0x18] sm:$0xf]
    %v565 = vld [vmem:[%s557 + $0x1c] sm:$0xf]
    %v566 = vpack.c.bf16 %v550, %v549
    %v567 = vpack.c.bf16 %v552, %v551
    %v568 = vpack.c.bf16 %v554, %v553
    %v569 = vpack.c.bf16 %v556, %v555
    %571 = vset.pattern.permute.xlu0 0
    %572 = vperm.xlu0 %571, %v183
    %v573 = vpop.permute.xlu0 %572
    %576 = vset.pattern.permute.xlu0 0
    %577 = vperm.xlu0 %576, %v184
    %v578 = vpop.permute.xlu0 %577
    %581 = vset.pattern.permute.xlu0 0
    %582 = vperm.xlu0 %581, %v185
    %v583 = vpop.permute.xlu0 %582
    %586 = vset.pattern.permute.xlu0 0
    %587 = vperm.xlu0 %586, %v186
    %v588 = vpop.permute.xlu0 %587
    %591 = vset.pattern.permute.xlu0 0
    %592 = vperm.xlu0 %591, %v187
    %v593 = vpop.permute.xlu0 %592
    %596 = vset.pattern.permute.xlu0 0
    %597 = vperm.xlu0 %596, %v188
    %v598 = vpop.permute.xlu0 %597
    %601 = vset.pattern.permute.xlu0 0
    %602 = vperm.xlu0 %601, %v189
    %v603 = vpop.permute.xlu0 %602
    %606 = vset.pattern.permute.xlu0 0
    %607 = vperm.xlu0 %606, %v190
    %v608 = vpop.permute.xlu0 %607
    %v618 = vunpack.c.l.b16 %v558
    %v619 = vunpack.c.l.b16 %v559
    %v620 = vunpack.c.l.b16 %v560
    %v621 = vunpack.c.l.b16 %v561
    %v622 = vunpack.c.l.b16 %v562
    %v623 = vunpack.c.l.b16 %v563
    %v624 = vunpack.c.l.b16 %v564
    %v625 = vunpack.c.l.b16 %v565
    %v626 = vpack.c.b16 %v619, %v618
    %v627 = vpack.c.b16 %v621, %v620
    %v628 = vpack.c.b16 %v623, %v622
    %v629 = vpack.c.b16 %v625, %v624
    %v631 = vsel %vm263, %v626, 0
    %v634 = vsel %vm263, %v627, 0
    %v637 = vsel %vm263, %v628, 0
    %v640 = vsel %vm263, %v629, 0
    %642 = vmatpush.bf16.msra.mxu0 0
    %643 = vmatpush.bf16.msra.mxu0 0
    %644 = vmatpush.bf16.msra.mxu0 0
    %645 = vmatpush.bf16.msra.mxu0 0
    %646 = vmatpush.bf16.msra.mxu0 %v569
    %647 = vmatpush.bf16.msra.mxu0 %v568
    %648 = vmatpush.bf16.msra.mxu0 %v567
    %649 = vmatpush.bf16.msra.mxu0 %v566
    %650 = vmatmul.bf16.gmra.mxu0 %v631
    %v651 = vpop.f32.mrf.mxu0
    %v652 = vadd.f32 %v573, %v651
    %v653 = vpop.f32.mrf.mxu0
    %v654 = vadd.f32 %v578, %v653
    %655 = vmatmul.bf16.gmra.mxu0 %v634
    %v656 = vpop.f32.mrf.mxu0
    %v657 = vadd.f32 %v583, %v656
    %v658 = vpop.f32.mrf.mxu0
    %v659 = vadd.f32 %v588, %v658
    %660 = vmatmul.bf16.gmra.mxu0 %v637
    %v661 = vpop.f32.mrf.mxu0
    %v662 = vadd.f32 %v593, %v661
    %v663 = vpop.f32.mrf.mxu0
    %v664 = vadd.f32 %v598, %v663
    %665 = vmatmul.bf16.gmra.mxu0 %v640
    %v666 = vpop.f32.mrf.mxu0
    %v667 = vadd.f32 %v603, %v666
    %v668 = vpop.f32.mrf.mxu0
    %v669 = vadd.f32 %v608, %v668
    %670 = vdwg.mxu0
    %v671 = vmax.f32 %v652, 0.0
    %v672 = vmax.f32 %v654, 0.0
    %v673 = vmax.f32 %v657, 0.0
    %v674 = vmax.f32 %v659, 0.0
    %v675 = vmax.f32 %v662, 0.0
    %v676 = vmax.f32 %v664, 0.0
    %v677 = vmax.f32 %v667, 0.0
    %v678 = vmax.f32 %v669, 0.0
    %v679 = vld [vmem:[%s5] sm:$0xff]
    %v680 = vld [vmem:[%s5 + $0x8] sm:$0xff]
    %v681 = vld [vmem:[%s5 + $0x10] sm:$0xff]
    %v682 = vld [vmem:[%s5 + $0x18] sm:$0xff]
    %v683 = vld [vmem:[%s5 + $0x20] sm:$0xff]
    %v684 = vld [vmem:[%s5 + $0x28] sm:$0xff]
    %v685 = vld [vmem:[%s5 + $0x30] sm:$0xff]
    %v686 = vld [vmem:[%s5 + $0x38] sm:$0xff]
    %688 = vset.pattern.permute.xlu0 0
    %689 = vperm.xlu0 %688, %v679
    %v690 = vpop.permute.xlu0 %689
    %693 = vset.pattern.permute.xlu0 0
    %694 = vperm.xlu0 %693, %v680
    %v695 = vpop.permute.xlu0 %694
    %698 = vset.pattern.permute.xlu0 0
    %699 = vperm.xlu0 %698, %v681
    %v700 = vpop.permute.xlu0 %699
    %703 = vset.pattern.permute.xlu0 0
    %704 = vperm.xlu0 %703, %v682
    %v705 = vpop.permute.xlu0 %704
    %708 = vset.pattern.permute.xlu0 0
    %709 = vperm.xlu0 %708, %v683
    %v710 = vpop.permute.xlu0 %709
    %713 = vset.pattern.permute.xlu0 0
    %714 = vperm.xlu0 %713, %v684
    %v715 = vpop.permute.xlu0 %714
    %718 = vset.pattern.permute.xlu0 0
    %719 = vperm.xlu0 %718, %v685
    %v720 = vpop.permute.xlu0 %719
    %723 = vset.pattern.permute.xlu0 0
    %724 = vperm.xlu0 %723, %v686
    %v725 = vpop.permute.xlu0 %724
    %v727 = vmul.f32 %v671, %v690
    %v728 = vmul.f32 %v672, %v695
    %v729 = vmul.f32 %v673, %v700
    %v730 = vmul.f32 %v674, %v705
    %v731 = vmul.f32 %v675, %v710
    %v732 = vmul.f32 %v676, %v715
    %v733 = vmul.f32 %v677, %v720
    %v734 = vmul.f32 %v678, %v725
    %v735 = vadd.f32 %v727, %v728
    %v736 = vadd.f32 %v735, %v729
    %v737 = vadd.f32 %v736, %v730
    %v738 = vadd.f32 %v737, %v731
    %v739 = vadd.f32 %v738, %v732
    %v740 = vadd.f32 %v739, %v733
    %v741 = vadd.f32 %v740, %v734
    %v742 = vrot.slane %v741, 4
    %v743 = vadd.f32 %v741, %v742
    %v744 = vrot.slane %v743, 2
    %v745 = vadd.f32 %v743, %v744
    %v746 = vrot.slane %v745, 1
    %v747 = vadd.f32 %v745, %v746
    %v748 = vld [vmem:[#allocation2] sm:$0x1]
    %750 = vset.pattern.permute.xlu0 0
    %751 = vperm.xlu0 %750, %v748
    %v752 = vpop.permute.xlu0 %751
    %v754 = vperm.slane %v752, 0
    %v755 = vadd.f32 %v747, %v754
    %756 = vst [vmem:[#allocation3] sm:$0x1] %v755
    // Predicated region
    $region30: #{tpu_custom_call.1} parent=1 // pred_check
      _
    $region31: #{tpu_custom_call.1} parent=1 // pred_check_branch
      %758 = sbr.rel (0) target = $region33
    $region32: #{tpu_custom_call.1} parent=1 // pred_region
      %760 = vsyncadd [#allocation4], 0
      %s762 = sshll.u32 [#allocation3], 4
      %s763 = int_to_ptr.vmem [resolvable:$true] %s762
      %s764 = sshll.u32 %s7, 4
      %s765 = int_to_ptr.hbm [resolvable:$true] %s764
      %767 = dma.vmem_to_hbm [thread:$0]  %s763, 16, %s765, [#allocation4]
    $region33: #{tpu_custom_call.1} parent=1 // pred_fallthru
      _
    // Predicated region
    $region34: #{tpu_custom_call.1} parent=1 // pred_check
      _
    $region35: #{tpu_custom_call.1} parent=1 // pred_check_branch
      %769 = sbr.rel (0) target = $region37
    $region36: #{tpu_custom_call.1} parent=1 // pred_region
      %771 = dma.done [#allocation4], 16
    $region37: #{tpu_custom_call.1} parent=1 // pred_fallthru
      _
    %772 = vsyncpa [#allocation4], 1

</llo_original>
